<compile_context>
chip_gen: v6e
topology: v6e:2x2x1
jax: 0.10.0
libtpu: 0.0.40
codegen_flags: <defaults>
</compile_context>

<pallas_src>
import functools

import jax
import jax.numpy as jnp
import numpy as np
from jax.experimental import pallas as pl
from jax.experimental.pallas import tpu as pltpu

MIN_DAYS_DIFF = 182
NBATCHCLASSIF = 4


def _total_loss_kernel(x_ref, y_ref, out_ref, *, nb, nph, min_days_diff):
    """x_ref/y_ref: (N/2, 2) views of the flat (N,) score / target vectors.

    Row r holds elements (2r, 2r+1).  Rows [0, nb/2) are classification
    examples; rows [nb/2, N/2) each hold one precedence pair (even, odd).
    out_ref: (1, 1) f32 scalar in SMEM.
    """
    nb2 = nb // 2

    # Single load per input; all further slicing happens in registers.
    xall = x_ref[...]                          # (N/2, 2) f32 scores
    yall = y_ref[...]                          # (N/2, 2) i32 labels / dates

    # ---- classification loss on the first nb elements (rows [0, nb2)) ----
    xc = xall[0:nb2, :]                        # (nb2, 2) scores
    yc = yall[0:nb2, :]                        # (nb2, 2) labels in {0, 1}
    # logsumexp over padded classes [0, x]:  max(x, 0) + log(1 + e^-|x|)
    lse_c = jnp.maximum(xc, 0.0) + jnp.log(1.0 + jnp.exp(-jnp.abs(xc)))
    tgt_c = jnp.where(yc != 0, xc, 0.0)        # class 0 has the implicit 0 logit
    lclassif = jnp.sum(lse_c - tgt_c) * (1.0 / nb)

    # ---- precedence loss on the remaining rows (one pair per row) ----
    xp = xall[nb2:, :]                         # (nph, 2): (x_even, x_odd)
    yp = yall[nb2:, :]                         # (nph, 2): (date_even, date_odd)
    d = xp[:, 0:1] - xp[:, 1:2]                # (nph, 1) x_even - x_odd
    dd = yp[:, 0:1] - yp[:, 1:2]               # (nph, 1) date_even - date_odd
    t = dd >= min_days_diff                    # target class (bool -> {0, 1})
    lse_p = jnp.maximum(d, 0.0) + jnp.log(1.0 + jnp.exp(-jnp.abs(d)))
    tgt_p = jnp.where(t, d, 0.0)
    lprec = jnp.sum(lse_p - tgt_p) * (1.0 / nph)

    out_ref[0, 0] = lclassif + lprec


def total_loss(x, y, nbatchclassif=NBATCHCLASSIF, min_days_diff=MIN_DAYS_DIFF):
    """Pallas implementation of TotalLoss.forward(x, y) for C == 1 scores."""
    x = jnp.asarray(x, jnp.float32)
    y = jnp.asarray(y, jnp.int32)

    if x.ndim != 2 or x.shape[1] != 1:
        # TODO(synk): general C>1 (and odd nbatchclassif) would need the (N, C)
        # sublane layout + one-hot gather path instead of this lane-pair layout.
        raise NotImplementedError("total_loss kernel is specialized to C == 1 scores")
    n = x.shape[0]
    if nbatchclassif % 2 != 0:
        raise ValueError("nbatchclassif must be even for the paired (N/2, 2) layout")
    if (n - nbatchclassif) <= 0 or (n - nbatchclassif) % 2 != 0:
        raise ValueError("number of precedence rows (N - nbatchclassif) must be a "
                         "positive even count (interleaved pairs)")
    nph = (n - nbatchclassif) // 2

    # Free row-major reshapes only: no wrapper-side slices / gathers.
    x2 = x.reshape(n // 2, 2)                  # row r = (elem 2r, elem 2r+1)
    y2 = y.reshape(n // 2, 2)

    kernel = functools.partial(_total_loss_kernel, nb=nbatchclassif, nph=nph,
                               min_days_diff=min_days_diff)

    cost = pl.CostEstimate(
        flops=12 * n,                                  # tiny elementwise kernel
        transcendentals=2 * (nbatchclassif + nph),     # one exp + one log per example
        bytes_accessed=x2.size * 4 + y2.size * 4 + 4,
    )

    out = pl.pallas_call(
        kernel,
        out_shape=jax.ShapeDtypeStruct((1, 1), jnp.float32),
        in_specs=[pl.BlockSpec(memory_space=pltpu.MemorySpace.VMEM),
                  pl.BlockSpec(memory_space=pltpu.MemorySpace.VMEM)],
        out_specs=pl.BlockSpec(memory_space=pltpu.MemorySpace.SMEM),
        cost_estimate=cost,
    )(x2, y2)
    return out[0, 0]


def total_loss_ref(x, y, nbatchclassif=NBATCHCLASSIF, min_days_diff=MIN_DAYS_DIFF):
    """Pure-JAX reference mirroring the PyTorch semantics."""
    x = x.astype(jnp.float32)
    y = y.astype(jnp.int32)

    def ce(pred, labels):
        lse = jax.scipy.special.logsumexp(pred, axis=1)
        tgt = jnp.take_along_axis(pred, labels[:, None], axis=1)[:, 0]
        return jnp.mean(lse - tgt)

    xc, yc = x[:nbatchclassif], y[:nbatchclassif]
    pred_c = jnp.concatenate([jnp.zeros((xc.shape[0], 1), jnp.float32), xc], axis=1)
    lclassif = ce(pred_c, yc)

    xp, yp = x[nbatchclassif:], y[nbatchclassif:]
    dd = yp[0::2] - yp[1::2]
    t = (dd >= min_days_diff).astype(jnp.int32)
    diff = xp[0::2] - xp[1::2]
    pred_p = jnp.concatenate([jnp.zeros((diff.shape[0], 1), jnp.float32), diff], axis=1)
    lprec = ce(pred_p, t)
    return lclassif + lprec


if __name__ == "__main__":
    key = jax.random.PRNGKey(0)
    k_x, k_lbl, k_base, k_off, k_sign = jax.random.split(key, 5)

    n_total = NBATCHCLASSIF + 8          # 4 classif rows + 4 precedence pairs
    C = 1

    x = jax.random.normal(k_x, (n_total, C), dtype=jnp.float32)

    # classif targets in [0, C]  (here {0, 1})
    labels = jax.random.randint(k_lbl, (NBATCHCLASSIF,), 0, C + 1, dtype=jnp.int32)

    # dates for precedence pairs, guaranteed |date_even - date_odd| >= min_days_diff
    nph = 4
    base = jax.random.randint(k_base, (nph,), 0, 3000, dtype=jnp.int32)
    off = jax.random.randint(k_off, (nph,), MIN_DAYS_DIFF, 500, dtype=jnp.int32)
    sign = 2 * jax.random.randint(k_sign, (nph,), 0, 2, dtype=jnp.int32) - 1
    date_even = base
    date_odd = base - sign * off
    dates = jnp.stack([date_even, date_odd], axis=1).reshape(-1)   # interleaved

    y = jnp.concatenate([labels, dates]).astype(jnp.int32)

    # replicate the module's input-validation asserts (wrapper-side only)
    assert bool(jnp.all(labels >= 0))
    dd = date_even - date_odd
    assert bool(jnp.all(~((-MIN_DAYS_DIFF < dd) & (dd < MIN_DAYS_DIFF))))

    out = jax.block_until_ready(total_loss(x, y))
    ref = jax.block_until_ready(total_loss_ref(x, y))
    np.testing.assert_allclose(np.asarray(out), np.asarray(ref), rtol=1e-5, atol=1e-5)

    print("KERNEL_OK")
</pallas_src>

<mosaic_0001>
module attributes {stable_mosaic.version = 11 : i64} {
  func.func @_total_loss_kernel(%arg0: memref<6x2xf32, #tpu.memory_space<vmem>>, %arg1: memref<6x2xi32, #tpu.memory_space<vmem>>, %arg2: memref<1x1xf32, #tpu.memory_space<smem>>) attributes {dimension_semantics = [], scalar_prefetch = 0 : i64, scratch_operands = 0 : i64, tpu.core_type = #tpu.core_type<tc>} {
    %c0 = arith.constant 0 : index
    %c0_0 = arith.constant 0 : index
    %0 = vector.load %arg0[%c0, %c0_0] : memref<6x2xf32, #tpu.memory_space<vmem>>, vector<6x2xf32>
    %c0_1 = arith.constant 0 : index
    %c0_2 = arith.constant 0 : index
    %1 = vector.load %arg1[%c0_1, %c0_2] : memref<6x2xi32, #tpu.memory_space<vmem>>, vector<6x2xi32>
    %2 = vector.extract_strided_slice %0 {offsets = [0, 0], sizes = [2, 2], strides = [1, 1]} : vector<6x2xf32> to vector<2x2xf32>
    %3 = vector.extract_strided_slice %1 {offsets = [0, 0], sizes = [2, 2], strides = [1, 1]} : vector<6x2xi32> to vector<2x2xi32>
    %cst = arith.constant 0.000000e+00 : f32
    %4 = vector.broadcast %cst : f32 to vector<2x2xf32>
    %5 = arith.maximumf %2, %4 : vector<2x2xf32>
    %6 = math.absf %2 : vector<2x2xf32>
    %cst_3 = arith.constant 0.000000e+00 : f32
    %7 = vector.broadcast %cst_3 : f32 to vector<2x2xf32>
    %8 = arith.subf %7, %6 : vector<2x2xf32>
    %9 = math.exp %8 : vector<2x2xf32>
    %cst_4 = arith.constant 1.000000e+00 : f32
    %10 = vector.broadcast %cst_4 : f32 to vector<2x2xf32>
    %11 = arith.addf %10, %9 : vector<2x2xf32>
    %12 = math.log %11 : vector<2x2xf32>
    %13 = arith.addf %5, %12 : vector<2x2xf32>
    %c0_i32 = arith.constant 0 : i32
    %14 = vector.broadcast %c0_i32 : i32 to vector<2x2xi32>
    %15 = arith.cmpi ne, %3, %14 : vector<2x2xi32>
    %cst_5 = arith.constant 0.000000e+00 : f32
    %16 = vector.broadcast %cst_5 : f32 to vector<2x2xf32>
    %17 = arith.select %15, %2, %16 : vector<2x2xi1>, vector<2x2xf32>
    %18 = arith.subf %13, %17 : vector<2x2xf32>
    %19 = vector.shape_cast %18 : vector<2x2xf32> to vector<1x2x2xf32>
    %cst_6 = arith.constant dense<0.000000e+00> : vector<1xf32>
    %20 = vector.multi_reduction <add>, %19, %cst_6 [1, 2] : vector<1x2x2xf32> to vector<1xf32>
    %21 = vector.shape_cast %20 : vector<1xf32> to vector<1x1x1xf32>
    %22 = vector.extract %21[0, 0, 0] : f32 from vector<1x1x1xf32>
    %cst_7 = arith.constant 2.500000e-01 : f32
    %23 = arith.mulf %22, %cst_7 : f32
    %24 = vector.extract_strided_slice %0 {offsets = [2, 0], sizes = [4, 2], strides = [1, 1]} : vector<6x2xf32> to vector<4x2xf32>
    %25 = vector.extract_strided_slice %1 {offsets = [2, 0], sizes = [4, 2], strides = [1, 1]} : vector<6x2xi32> to vector<4x2xi32>
    %26 = vector.extract_strided_slice %24 {offsets = [0, 0], sizes = [4, 1], strides = [1, 1]} : vector<4x2xf32> to vector<4x1xf32>
    %27 = vector.extract_strided_slice %24 {offsets = [0, 1], sizes = [4, 1], strides = [1, 1]} : vector<4x2xf32> to vector<4x1xf32>
    %28 = arith.subf %26, %27 : vector<4x1xf32>
    %29 = vector.extract_strided_slice %25 {offsets = [0, 0], sizes = [4, 1], strides = [1, 1]} : vector<4x2xi32> to vector<4x1xi32>
    %30 = vector.extract_strided_slice %25 {offsets = [0, 1], sizes = [4, 1], strides = [1, 1]} : vector<4x2xi32> to vector<4x1xi32>
    %31 = arith.subi %29, %30 : vector<4x1xi32>
    %c182_i32 = arith.constant 182 : i32
    %32 = vector.broadcast %c182_i32 : i32 to vector<4x1xi32>
    %33 = arith.cmpi sge, %31, %32 : vector<4x1xi32>
    %cst_8 = arith.constant 0.000000e+00 : f32
    %34 = vector.broadcast %cst_8 : f32 to vector<4x1xf32>
    %35 = arith.maximumf %28, %34 : vector<4x1xf32>
    %36 = math.absf %28 : vector<4x1xf32>
    %cst_9 = arith.constant 0.000000e+00 : f32
    %37 = vector.broadcast %cst_9 : f32 to vector<4x1xf32>
    %38 = arith.subf %37, %36 : vector<4x1xf32>
    %39 = math.exp %38 : vector<4x1xf32>
    %cst_10 = arith.constant 1.000000e+00 : f32
    %40 = vector.broadcast %cst_10 : f32 to vector<4x1xf32>
    %41 = arith.addf %40, %39 : vector<4x1xf32>
    %42 = math.log %41 : vector<4x1xf32>
    %43 = arith.addf %35, %42 : vector<4x1xf32>
    %cst_11 = arith.constant 0.000000e+00 : f32
    %44 = vector.broadcast %cst_11 : f32 to vector<4x1xf32>
    %45 = arith.select %33, %28, %44 : vector<4x1xi1>, vector<4x1xf32>
    %46 = arith.subf %43, %45 : vector<4x1xf32>
    %47 = vector.shape_cast %46 : vector<4x1xf32> to vector<1x4x1xf32>
    %cst_12 = arith.constant dense<0.000000e+00> : vector<1xf32>
    %48 = vector.multi_reduction <add>, %47, %cst_12 [1, 2] : vector<1x4x1xf32> to vector<1xf32>
    %49 = vector.shape_cast %48 : vector<1xf32> to vector<1x1x1xf32>
    %50 = vector.extract %49[0, 0, 0] : f32 from vector<1x1x1xf32>
    %cst_13 = arith.constant 2.500000e-01 : f32
    %51 = arith.mulf %50, %cst_13 : f32
    %52 = arith.addf %23, %51 : f32
    %c0_14 = arith.constant 0 : index
    %c0_15 = arith.constant 0 : index
    %53 = memref.load %arg2[%c0_14, %c0_15] : memref<1x1xf32, #tpu.memory_space<smem>>
    memref.store %52, %arg2[%c0_14, %c0_15] : memref<1x1xf32, #tpu.memory_space<smem>>
    return
  }
}

</mosaic_0001>

<llo_original>
// kernel: tpu_custom_call.1
$region0: #{tpu_custom_call.1}
  #allocation0 [shape = 'u32[]', space=smem, size = 0x4, offset = 0x4, fixed_abs, tag = 'smem constant byte address 0x4 - core index']
  #allocation1 [shape = 'u32[144,128]{1,0:T(1,128)}', space=vmem, size = 0x12000, scoped, tag = 'internal scratch']
  %s0 = inlined_call_operand.vmem [shape: f32[6,2], index: 0, kind: input, shape index: {}]
  %s1 = inlined_call_operand.vmem [shape: s32[6,2], index: 1, kind: input, shape index: {}]
  %s2 = inlined_call_operand.hbm [shape: f32[1,1], index: 2, kind: output, shape index: {}]
  %s3 = sld [smem:[#allocation0]]
  $region18: #{tpu_custom_call.1} parent=0
    _
  %s5 = ssub.s32 1, %s3
  %s6 = scalar_select 0, %s5, %s3
  $region1: #{tpu_custom_call.1} parent=0
    #allocation2 [shape = 'u8[512]{0}', space=smem, size = 0x200, scoped, tag = 'output window, operand 0, single buffered']
    #allocation3 [shape = 's32[1]{0}', space=sflag, size = 0x4, scoped, tag = 'scoped memory for tpu_custom_call.1']
    %7 = vsyncpa [#allocation3], 0
    // Predicated region
    $region2: #{tpu_custom_call.1} parent=1 // pred_check
      _
    $region3: #{tpu_custom_call.1} parent=1 // pred_check_branch
      %9 = sbr.rel (0) target = $region5
    $region4: #{tpu_custom_call.1} parent=1 // pred_region
      _
    $region5: #{tpu_custom_call.1} parent=1 // pred_fallthru
      _
    // Predicated region
    $region6: #{tpu_custom_call.1} parent=1 // pred_check
      _
    $region7: #{tpu_custom_call.1} parent=1 // pred_check_branch
      %11 = sbr.rel (0) target = $region9
    $region8: #{tpu_custom_call.1} parent=1 // pred_region
      _
    $region9: #{tpu_custom_call.1} parent=1 // pred_fallthru
      _
    %v12 = vld [vmem:[%s0] sm:$0x3f]
    %v13 = vld [vmem:[%s1] sm:$0x3f]
    %v14 = vmax.f32 %v12, 0.0
    %v15 = vand.u32 2147483647, %v12
    %v16 = vsub.f32 0.0, %v15
    %v17 = vmul.f32 %v16, 1.442695
    %v18 = vpow.pop %v17
    %v19 = vadd.f32 %v18, 1.0
    %v20 = vlog2.pop %v19
    %v21 = vmul.f32 %v20, 0.6931472
    %v22 = vadd.f32 %v14, %v21
    %vm23 = vcmp.ne.s32.totalorder %v13, 0
    %v24 = vsel %vm23, %v12, 0.0
    %v25 = vsub.f32 %v22, %v24
    %vm26 = vcmask 9216
    %v27 = vsel %vm26, %v25, 0.0
    %28 = vadd.xlane.f32.xlu0 %v27
    %v29 = vpop.xlane.xlu0 %28
    %v30 = vrot.slane %v29, 4
    %v31 = vadd.f32 %v29, %v30
    %v32 = vrot.slane %v31, 2
    %v33 = vadd.f32 %v31, %v32
    %v34 = vrot.slane %v33, 1
    %v35 = vadd.f32 %v33, %v34
    %s36 = vtos %v35
    %s37 = smul.f32 %s36, 0.25
    %39 = vrot.lane.b32.xlu0 %v12, 127
    %v40 = vpop.permute.xlu0 %39
    %v42 = vsub.f32 %v12, %v40
    %43 = vrot.lane.b32.xlu0 %v13, 127
    %v44 = vpop.permute.xlu0 %43
    %v45 = vsub.s32 %v13, %v44
    %vm46 = vcmp.ge.s32.totalorder %v45, 182
    %v47 = vmax.f32 %v42, 0.0
    %v48 = vand.u32 2147483647, %v42
    %v49 = vsub.f32 0.0, %v48
    %v50 = vmul.f32 %v49, 1.442695
    %v51 = vpow.pop %v50
    %v52 = vadd.f32 %v51, 1.0
    %v53 = vlog2.pop %v52
    %v54 = vmul.f32 %v53, 0.6931472
    %v55 = vadd.f32 %v47, %v54
    %v56 = vsel %vm46, %v42, 0.0
    %v57 = vsub.f32 %v55, %v56
    %v59 = vrot.slane %v57, 2
    %vm61 = vcmask 3072
    %v62 = vsel %vm61, %v59, 0.0
    %63 = vadd.xlane.f32.xlu0 %v62
    %v64 = vpop.xlane.xlu0 %63
    %v65 = vrot.slane %v64, 4
    %v66 = vadd.f32 %v64, %v65
    %v67 = vrot.slane %v66, 2
    %v68 = vadd.f32 %v66, %v67
    %v69 = vrot.slane %v68, 1
    %v70 = vadd.f32 %v68, %v69
    %s71 = vtos %v70
    %s72 = smul.f32 %s71, 0.25
    %s73 = sadd.f32 %s37, %s72
    %s74 = scalar_lea.smem [#allocation2], 0
    %75 = sst [smem:[%s74]] %s73
    // Predicated region
    $region10: #{tpu_custom_call.1} parent=1 // pred_check
      _
    $region11: #{tpu_custom_call.1} parent=1 // pred_check_branch
      %77 = sbr.rel (0) target = $region13
    $region12: #{tpu_custom_call.1} parent=1 // pred_region
      %s79 = ssub.s32 16, 16
      %80 = vsyncadd [#allocation3], %s79
      %83 = dma.smem_to_hbm [#allocation2], 16, %s2, [#allocation3]
    $region13: #{tpu_custom_call.1} parent=1 // pred_fallthru
      _
    // Predicated region
    $region14: #{tpu_custom_call.1} parent=1 // pred_check
      _
    $region15: #{tpu_custom_call.1} parent=1 // pred_check_branch
      %85 = sbr.rel (0) target = $region17
    $region16: #{tpu_custom_call.1} parent=1 // pred_region
      %86 = dma.done [#allocation3], 16
    $region17: #{tpu_custom_call.1} parent=1 // pred_fallthru
      _
    %87 = sfence
    %88 = vsyncpa [#allocation3], 1

</llo_original>
